<compile_context>
chip_gen: v5e
topology: v5e:2x2
jax: 0.10.0
libtpu: 0.0.40
codegen_flags: <defaults>
</compile_context>

<pallas_src>
import jax
import jax.numpy as jnp
from jax.experimental import pallas as pl
from jax.experimental.pallas import tpu as pltpu

# Deterministic trapezoid corners (a < b <= c < d).
A, B, C, D = 0.0, 0.25, 0.75, 1.0
# Fold the divisions into multiplies at trace time (VALU, no vdiv/EUP).
INV_BA = 1.0 / (B - A)
INV_DC = 1.0 / (D - C)

LANE = 128
MIN_SPLIT_BYTES = 1 << 20   # inputs >= 1 MiB are split into >= 2 blocks (v7x 2-TC)


def _round_up(x, m):
    return ((x + m - 1) // m) * m


def _sublane_pack(dtype):
    # Rows per sublane pack: 8 for 4-byte, 16 for 2-byte, 32 for 1-byte dtypes.
    return max(8, 32 // dtype.itemsize)


def _target_tile_bytes():
    # Per-buffer byte budget.  4 live buffers (double-buffered in + out):
    #   v2-v5 class (16 MiB scoped-VMEM default): 4 x 2 MiB = 8 MiB,
    #   v6e / v7x  (32 MiB scoped default):       4 x 4 MiB = 16 MiB.
    try:
        kind = jax.devices()[0].device_kind.lower()
    except Exception:
        return 2 << 20
    if any(v in kind for v in ("v2", "v3", "v4", "v5")):
        return 2 << 20
    return 4 << 20


def _pick_tile_rows(rows, dtype):
    """Rows (of 128 lanes) per block: byte-budget sized, pack-aligned, and
    guaranteeing >= 2 grid steps for >= 1 MiB inputs (v7x megacore)."""
    itemsize = dtype.itemsize
    pack = _sublane_pack(dtype)
    max_rows = max(pack, (_target_tile_bytes() // (LANE * itemsize)) // pack * pack)
    if rows > max_rows:
        return max_rows                               # many blocks
    if rows * LANE * itemsize >= MIN_SPLIT_BYTES and rows > pack:
        return _round_up(pl.cdiv(rows, 2), pack)      # exactly 2 blocks
    return rows                                       # single full-extent block


def _fuzzy_kernel(x_ref, o_ref):
    x = x_ref[...]
    # f32 / bf16 compute natively (bf16 VALU packs 2/lane on v6e/v7x);
    # upcast any other dtype to f32 in-register.
    if x.dtype not in (jnp.float32, jnp.bfloat16):
        x = x.astype(jnp.float32)
    left = (x - A) * INV_BA
    right = (D - x) * INV_DC
    o_ref[...] = jnp.maximum(jnp.minimum(left, right), 0.0).astype(o_ref.dtype)


def _call(x_nd, block_shape, grid, index_map):
    return pl.pallas_call(
        _fuzzy_kernel,
        out_shape=jax.ShapeDtypeStruct(x_nd.shape, x_nd.dtype),
        grid_spec=pltpu.PrefetchScalarGridSpec(
            num_scalar_prefetch=0,
            grid=grid,
            in_specs=[pl.BlockSpec(block_shape, index_map)],
            out_specs=pl.BlockSpec(block_shape, index_map),
        ),
        compiler_params=pltpu.CompilerParams(
            # Single axis sharded across TensorCores (matters on v7x's 2 TCs).
            dimension_semantics=("parallel",),
        ),
    )(x_nd)


def fuzzy_membership(x):
    """Trapezoidal membership of x (any float dtype, any shape)."""
    orig_shape = x.shape
    dtype = x.dtype
    n_elem = x.size

    if n_elem % LANE == 0:
        # Lane-dense (rows, 128) view -- reshape of a contiguous array is free.
        rows = n_elem // LANE
        tile_rows = _pick_tile_rows(rows, dtype)
        out = _call(
            x.reshape(rows, LANE),
            (tile_rows, LANE),
            (pl.cdiv(rows, tile_rows),),
            lambda i: (i, 0),
        )
    else:
        # Ragged fallback: flat 1-D blocks; Pallas masks the partial tail block.
        # No jnp.pad + trailing-slice HBM round-trips.
        rows = pl.cdiv(n_elem, LANE)
        tile_rows = _pick_tile_rows(rows, dtype)
        tile_elems = n_elem if tile_rows >= rows else tile_rows * LANE
        out = _call(
            x.reshape(-1),
            (tile_elems,),
            (pl.cdiv(n_elem, tile_elems),),
            lambda i: (i,),
        )
    return out.reshape(orig_shape)


if __name__ == "__main__":
    key = jax.random.PRNGKey(0)

    # NCHW input spanning the trapezoid support (numel % 128 == 0 -> 2-D path).
    x = jax.random.uniform(key, (2, 4, 16, 16), dtype=jnp.float32,
                           minval=-0.5, maxval=1.5)
    y = jax.block_until_ready(fuzzy_membership(x))
    ref = jnp.maximum(jnp.minimum((x - A) / (B - A), (D - x) / (D - C)), 0.0)
    assert y.shape == x.shape and y.dtype == x.dtype
    assert jnp.allclose(y, ref, atol=1e-6), "mismatch vs reference (aligned path)"

    # Ragged path (numel % 128 != 0 -> flat 1-D blocks, no pad/slice).
    x2 = jax.random.uniform(jax.random.PRNGKey(0), (3, 5, 7, 3),
                            dtype=jnp.float32, minval=-0.5, maxval=1.5)
    y2 = jax.block_until_ready(fuzzy_membership(x2))
    ref2 = jnp.maximum(jnp.minimum((x2 - A) / (B - A), (D - x2) / (D - C)), 0.0)
    assert y2.shape == x2.shape and y2.dtype == x2.dtype
    assert jnp.allclose(y2, ref2, atol=1e-6), "mismatch vs reference (ragged path)"

    print("KERNEL_OK")
</pallas_src>

<mosaic_0001>
module attributes {stable_mosaic.version = 11 : i64} {
  func.func @_fuzzy_kernel(%arg0: i32, %arg1: memref<16x128xf32, #tpu.memory_space<vmem>>, %arg2: memref<16x128xf32, #tpu.memory_space<vmem>>) attributes {dimension_semantics = [#tpu.dimension_semantics<parallel>], iteration_bounds = array<i64: 1>, scalar_prefetch = 0 : i64, scratch_operands = 0 : i64, tpu.core_type = #tpu.core_type<tc>, window_params = [{transform_indices = @transform_0, window_bounds = array<i64: 16, 128>}, {transform_indices = @transform_1, window_bounds = array<i64: 16, 128>}]} {
    %c0 = arith.constant 0 : index
    %c0_0 = arith.constant 0 : index
    %0 = vector.load %arg1[%c0, %c0_0] : memref<16x128xf32, #tpu.memory_space<vmem>>, vector<16x128xf32>
    %cst = arith.constant 0.000000e+00 : f32
    %1 = vector.broadcast %cst : f32 to vector<16x128xf32>
    %2 = arith.subf %0, %1 : vector<16x128xf32>
    %cst_1 = arith.constant 4.000000e+00 : f32
    %3 = vector.broadcast %cst_1 : f32 to vector<16x128xf32>
    %4 = arith.mulf %2, %3 : vector<16x128xf32>
    %cst_2 = arith.constant 1.000000e+00 : f32
    %5 = vector.broadcast %cst_2 : f32 to vector<16x128xf32>
    %6 = arith.subf %5, %0 : vector<16x128xf32>
    %cst_3 = arith.constant 4.000000e+00 : f32
    %7 = vector.broadcast %cst_3 : f32 to vector<16x128xf32>
    %8 = arith.mulf %6, %7 : vector<16x128xf32>
    %9 = arith.minimumf %4, %8 : vector<16x128xf32>
    %cst_4 = arith.constant 0.000000e+00 : f32
    %10 = vector.broadcast %cst_4 : f32 to vector<16x128xf32>
    %11 = arith.maximumf %9, %10 : vector<16x128xf32>
    %c0_5 = arith.constant 0 : index
    %c0_6 = arith.constant 0 : index
    %12 = vector.load %arg2[%c0_5, %c0_6] : memref<16x128xf32, #tpu.memory_space<vmem>>, vector<16x128xf32>
    tpu.vector_store %arg2[%c0_5, %c0_6], %11 {strides = array<i32>} : memref<16x128xf32, #tpu.memory_space<vmem>>, vector<16x128xf32>,
    return
  }
  func.func @transform_0(%arg0: i32) -> (i32, i32) {
    %c0_i32 = arith.constant 0 : i32
    %c0_i32_0 = arith.constant 0 : i32
    return %arg0, %c0_i32 : i32, i32
  }
  func.func @transform_1(%arg0: i32) -> (i32, i32) {
    %c0_i32 = arith.constant 0 : i32
    %c0_i32_0 = arith.constant 0 : i32
    return %arg0, %c0_i32 : i32, i32
  }
}

</mosaic_0001>

<llo_original>
// kernel: tpu_custom_call.1
$region0: #{tpu_custom_call.1}
  #allocation0 [shape = 'u32[]', space=smem, size = 0x4, offset = 0x4, fixed_abs, tag = 'smem constant byte address 0x4 - core index']
  #allocation1 [shape = 'u32[72,128]{1,0:T(1,128)}', space=vmem, size = 0x9000, scoped, tag = 'internal scratch']
  %s0 = inlined_call_operand.hbm [shape: f32[16,128], index: 0, kind: input, shape index: {}]
  %s1 = inlined_call_operand.hbm [shape: f32[16,128], index: 1, kind: output, shape index: {}]
  %s2 = sld [smem:[#allocation0]]
  $region18: #{tpu_custom_call.1} parent=0
    _
  %s4 = ssub.s32 1, %s2
  %s5 = scalar_select 0, %s4, %s2
  $region1: #{tpu_custom_call.1} parent=0
    #allocation2 [shape = 'u8[8192]{0}', space=vmem, size = 0x2000, scoped, tag = 'input window, operand 0, single buffered']
    #allocation3 [shape = 's32[1]{0}', space=sflag, size = 0x4, scoped, tag = 'scoped memory for tpu_custom_call.1']
    #allocation4 [shape = 's32[1]{0}', space=sflag, size = 0x4, scoped, tag = 'scoped memory for tpu_custom_call.1']
    #allocation5 [shape = 'u8[8192]{0}', space=vmem, size = 0x2000, scoped, tag = 'output window, operand 0, single buffered']
    %6 = vsyncpa [#allocation3], 0
    %7 = vsyncpa [#allocation4], 0
    // Predicated region
    $region2: #{tpu_custom_call.1} parent=1 // pred_check
      _
    $region3: #{tpu_custom_call.1} parent=1 // pred_check_branch
      %9 = sbr.rel (0) target = $region5
    $region4: #{tpu_custom_call.1} parent=1 // pred_region
      %11 = vsyncadd [#allocation3], 0
      %s12 = sshll.u32 %s0, 4
      %s13 = int_to_ptr.hbm [resolvable:$true] %s12
      %s14 = sshll.u32 [#allocation2], 4
      %s15 = int_to_ptr.vmem [resolvable:$true] %s14
      %20 = dma.hbm_to_vmem [thread:$0]  %s13, 256, %s15, [#allocation3], 128, 128, 8
    $region5: #{tpu_custom_call.1} parent=1 // pred_fallthru
      _
    // Predicated region
    $region6: #{tpu_custom_call.1} parent=1 // pred_check
      _
    $region7: #{tpu_custom_call.1} parent=1 // pred_check_branch
      %22 = sbr.rel (0) target = $region9
    $region8: #{tpu_custom_call.1} parent=1 // pred_region
      %24 = dma.done [#allocation3], 256
    $region9: #{tpu_custom_call.1} parent=1 // pred_fallthru
      _
    %v25 = vld [vmem:[#allocation2] sm:$0xff]
    %v26 = vld [vmem:[#allocation2 + $0x8] sm:$0xff]
    %v27 = vmul.f32 %v25, 4.0
    %v28 = vmul.f32 %v26, 4.0
    %v29 = vsub.f32 1.0, %v25
    %v30 = vsub.f32 1.0, %v26
    %v31 = vmul.f32 %v29, 4.0
    %v32 = vmul.f32 %v30, 4.0
    %v33 = vmin.f32 %v27, %v31
    %v34 = vmin.f32 %v28, %v32
    %v35 = vmax.f32 %v33, 0.0
    %v36 = vmax.f32 %v34, 0.0
    %37 = vst [vmem:[#allocation5] sm:$0xff] %v35
    %38 = vst [vmem:[#allocation5 + $0x8] sm:$0xff] %v36
    // Predicated region
    $region10: #{tpu_custom_call.1} parent=1 // pred_check
      _
    $region11: #{tpu_custom_call.1} parent=1 // pred_check_branch
      %40 = sbr.rel (0) target = $region13
    $region12: #{tpu_custom_call.1} parent=1 // pred_region
      %42 = vsyncadd [#allocation4], 0
      %s43 = sshll.u32 [#allocation5], 4
      %s44 = int_to_ptr.vmem [resolvable:$true] %s43
      %s45 = sshll.u32 %s1, 4
      %s46 = int_to_ptr.hbm [resolvable:$true] %s45
      %51 = dma.vmem_to_hbm [thread:$0]  %s44, 256, %s46, [#allocation4], 128, 128, 8
    $region13: #{tpu_custom_call.1} parent=1 // pred_fallthru
      _
    // Predicated region
    $region14: #{tpu_custom_call.1} parent=1 // pred_check
      _
    $region15: #{tpu_custom_call.1} parent=1 // pred_check_branch
      %53 = sbr.rel (0) target = $region17
    $region16: #{tpu_custom_call.1} parent=1 // pred_region
      %55 = dma.done [#allocation4], 256
    $region17: #{tpu_custom_call.1} parent=1 // pred_fallthru
      _
    %56 = vsyncpa [#allocation3], 1
    %57 = vsyncpa [#allocation4], 1

</llo_original>
